<compile_context>
chip_gen: v5e
topology: v5e:2x2
jax: 0.10.0
libtpu: 0.0.40
codegen_flags: <defaults>
</compile_context>

<pallas_src>
import math

import jax
import jax.numpy as jnp
from jax.experimental import pallas as pl
from jax.experimental.pallas import tpu as pltpu

_MIB = 1024 * 1024


# ---------------------------------------------------------------------------
# Kernels (pure VPU elementwise; never builds a 2n-wide intermediate).
# ---------------------------------------------------------------------------
def _two_to_one_kernel_bias(xl_ref, xr_ref, p_ref, o_ref):
    # xl_ref/xr_ref: (TB, TN) left/right halves of x for this tile (VMEM)
    # p_ref:         (3, TN)  rows = [weight[:n] slice, weight[n:] slice, bias slice]
    # o_ref:         (TB, TN)
    wl = p_ref[0:1, :].astype(jnp.float32)
    wr = p_ref[1:2, :].astype(jnp.float32)
    b = p_ref[2:3, :].astype(jnp.float32)
    acc = (xl_ref[...].astype(jnp.float32) * wl
           + xr_ref[...].astype(jnp.float32) * wr
           + b)
    o_ref[...] = acc.astype(o_ref.dtype)


def _two_to_one_kernel_nobias(xl_ref, xr_ref, p_ref, o_ref):
    # p_ref: (2, TN)  rows = [weight[:n] slice, weight[n:] slice]
    wl = p_ref[0:1, :].astype(jnp.float32)
    wr = p_ref[1:2, :].astype(jnp.float32)
    acc = (xl_ref[...].astype(jnp.float32) * wl
           + xr_ref[...].astype(jnp.float32) * wr)
    o_ref[...] = acc.astype(o_ref.dtype)


# ---------------------------------------------------------------------------
# Tiling / sizing heuristics.
# ---------------------------------------------------------------------------
def _round_up(x, m):
    return (x + m - 1) // m * m


def _vmem_plan():
    """Return (data_budget_bytes, vmem_limit_bytes) for the local TPU generation."""
    cap = None
    try:
        cap = getattr(pltpu.get_tpu_info(), "vmem_capacity_bytes", None)
    except Exception:
        cap = None
    if cap is None:
        try:
            kind = jax.devices()[0].device_kind.lower()
            cap = 64 * _MIB if "v7" in kind else 128 * _MIB
        except Exception:
            cap = None
    if cap is None:
        # Unknown hardware: conservative budget, keep the default scoped limit.
        return 12 * _MIB, None
    if cap <= 80 * _MIB:
        # v7x-class (64 MiB physical VMEM per TensorCore): bigger tiles to
        # amortize fixed per-step overhead at 3.2 TB/s, explicit limit < 64 MiB.
        return 36 * _MIB, 52 * _MIB
    # v5e / v6e (128 MiB physical): plenty of headroom for an explicit limit.
    return 24 * _MIB, 48 * _MIB


def _choose_feature_tile(n, max_tn=2048):
    """Return (tn, n_pad): tn a multiple of 128 dividing n_pad, n_pad >= n."""
    n128 = _round_up(n, 128)
    if n128 <= max_tn:
        return n128, n128
    # Prefer a large multiple-of-128 divisor of the 128-padded width (no pad).
    best_div = 128
    for t in range(256, max_tn + 1, 128):
        if n128 % t == 0:
            best_div = t
    if best_div >= 512:
        return best_div, n128
    # No good divisor: accept a little column padding for long HBM bursts.
    best_tn, best_pad = 512, _round_up(n, 512)
    for t in range(640, max_tn + 1, 128):
        p = _round_up(n, t)
        if p <= best_pad:
            best_tn, best_pad = t, p
    return best_tn, best_pad


def _choose_batch_tile(B, tn, itemsize, data_budget, n_fblocks):
    """Largest sublane-aligned TB whose double-buffered footprint fits the budget."""
    sublane = max(8, 32 // itemsize)          # 8 f32, 16 bf16, 32 int8/fp8
    per_row = 3 * 2 * tn * itemsize           # xl, xr, out tiles, double-buffered
    tb = max(sublane, (data_budget // per_row) // sublane * sublane)
    if tb >= B:
        tb = B
        # Guarantee >=2 grid blocks so v7x's second TensorCore gets work.
        if n_fblocks == 1 and B >= 2 * sublane:
            tb = _round_up((B + 1) // 2, sublane)
    return tb


# ---------------------------------------------------------------------------
# Wrapper.
# ---------------------------------------------------------------------------
def two_to_one_linear(x, weight, bias=None, *, tb=None, tn=None):
    """x: (B, 2n), weight: (2n,), bias: (n,) or None -> (B, n)."""
    B, twon = x.shape
    assert twon % 2 == 0, "feature dimension must be even"
    n = twon // 2
    assert weight.shape == (twon,)
    has_bias = bias is not None
    if has_bias:
        assert bias.shape == (n,)

    itemsize = jnp.dtype(x.dtype).itemsize
    sublane = max(8, 32 // itemsize)
    data_budget, vmem_limit = _vmem_plan()

    # Feature tile (and padded half-width so tn | n_pad always holds).
    if tn is None:
        tn, n_pad = _choose_feature_tile(n)
    else:
        assert tn % 128 == 0, "tn must be a multiple of 128 (TPU lane width)"
        n_pad = _round_up(n, tn)
    n_fblocks = n_pad // tn

    # Batch tile.
    if tb is None:
        tb = _choose_batch_tile(B, tn, itemsize, data_budget, n_fblocks)
    else:
        assert tb == B or tb % sublane == 0
    nb = pl.cdiv(B, tb)   # ragged last batch block is handled by Pallas masking

    # Prepare inputs (copy-free when n is already tn-aligned).
    if n_pad != n:
        # TODO(synk): the padding path costs one extra HBM copy of x; the
        # common multiple-of-128 n is copy-free.
        pad = n_pad - n
        xl = jnp.pad(x[:, :n], ((0, 0), (0, pad)))
        xr = jnp.pad(x[:, n:], ((0, 0), (0, pad)))
        x_in = jnp.concatenate([xl, xr], axis=1)
        wl = jnp.pad(weight[:n], (0, pad))
        wr = jnp.pad(weight[n:], (0, pad))
        b_p = jnp.pad(bias, (0, pad)) if has_bias else None
    else:
        x_in = x
        wl, wr = weight[:n], weight[n:]
        b_p = bias

    # One stacked side-array for all parameters (2 or 3 rows).
    rows = [wl, wr] + ([b_p] if has_bias else [])
    params = jnp.stack(rows, axis=0)
    p_rows = params.shape[0]
    kernel = _two_to_one_kernel_bias if has_bias else _two_to_one_kernel_nobias

    # Advisory cost: pure HBM-bandwidth-bound elementwise op.
    bytes_accessed = (3 * B * n_pad) * itemsize \
        + int(params.size) * jnp.dtype(params.dtype).itemsize
    cost = pl.CostEstimate(flops=(3 if has_bias else 2) * B * n,
                           transcendentals=0,
                           bytes_accessed=int(bytes_accessed))

    cp_kwargs = dict(dimension_semantics=("parallel", "parallel"))
    if vmem_limit is not None:
        cp_kwargs["vmem_limit_bytes"] = int(vmem_limit)
    compiler_params = pltpu.CompilerParams(**cp_kwargs)

    out = pl.pallas_call(
        kernel,
        out_shape=jax.ShapeDtypeStruct((B, n_pad), x.dtype),
        grid_spec=pltpu.PrefetchScalarGridSpec(
            num_scalar_prefetch=0,
            # Feature axis OUTER, batch axis INNER: the params block index is
            # constant across the inner loop -> params stay resident in VMEM.
            grid=(n_fblocks, nb),
            in_specs=[
                # Left / right halves of x: two block views of the same array.
                pl.BlockSpec((tb, tn), lambda j, i: (i, j)),
                pl.BlockSpec((tb, tn), lambda j, i: (i, j + n_fblocks)),
                # Stacked [wl; wr; (bias)] slice for this feature block.
                pl.BlockSpec((p_rows, tn), lambda j, i: (0, j)),
            ],
            out_specs=pl.BlockSpec((tb, tn), lambda j, i: (i, j)),
        ),
        compiler_params=compiler_params,
        cost_estimate=cost,
    )(x_in, x_in, params)

    if n_pad != n:
        out = out[:, :n]
    return out


# ---------------------------------------------------------------------------
# Self-test.
# ---------------------------------------------------------------------------
if __name__ == "__main__":
    key = jax.random.PRNGKey(0)
    kx, kw, kb, kx2, kw2, kb2 = jax.random.split(key, 6)

    # Case 1/2/3: n multiple of 128 (copy-free path), with and without bias.
    B, n = 384, 256
    stdv = 1.0 / math.sqrt(n)
    x = jax.random.normal(kx, (B, 2 * n), dtype=jnp.float32)
    weight = jax.random.uniform(kw, (2 * n,), minval=-stdv, maxval=stdv,
                                dtype=jnp.float32)
    bias = jax.random.uniform(kb, (n,), minval=-stdv, maxval=stdv,
                              dtype=jnp.float32)

    prod = x * weight[None, :]
    ref = prod[:, :n] + prod[:, n:] + bias[None, :]
    ref_nobias = prod[:, :n] + prod[:, n:]

    # Explicit small tiles (exercises the (feature, batch) grid = (2, 3)).
    out_tiled = jax.block_until_ready(
        two_to_one_linear(x, weight, bias, tb=128, tn=128))
    # Auto-tile path (exercises the >=2-block batch split).
    out_auto = jax.block_until_ready(two_to_one_linear(x, weight, bias))
    # Bias-less kernel variant.
    out_nb = jax.block_until_ready(two_to_one_linear(x, weight, None))

    assert out_tiled.shape == (B, n) and out_auto.shape == (B, n)
    assert jnp.allclose(out_tiled, ref, atol=1e-6, rtol=1e-6)
    assert jnp.allclose(out_auto, ref, atol=1e-6, rtol=1e-6)
    assert jnp.allclose(out_nb, ref_nobias, atol=1e-6, rtol=1e-6)

    # Case 4: awkward n (not a multiple of 128) -> wrapper-side padding path.
    B2, n2 = 64, 200
    stdv2 = 1.0 / math.sqrt(n2)
    x2 = jax.random.normal(kx2, (B2, 2 * n2), dtype=jnp.float32)
    w2 = jax.random.uniform(kw2, (2 * n2,), minval=-stdv2, maxval=stdv2,
                            dtype=jnp.float32)
    b2 = jax.random.uniform(kb2, (n2,), minval=-stdv2, maxval=stdv2,
                            dtype=jnp.float32)
    prod2 = x2 * w2[None, :]
    ref2 = prod2[:, :n2] + prod2[:, n2:] + b2[None, :]
    out2 = jax.block_until_ready(two_to_one_linear(x2, w2, b2))
    assert out2.shape == (B2, n2)
    assert jnp.allclose(out2, ref2, atol=1e-6, rtol=1e-6)

    print("KERNEL_OK")
</pallas_src>

<mosaic_0001>
module attributes {stable_mosaic.version = 11 : i64} {
  func.func @_two_to_one_kernel_bias(%arg0: i32, %arg1: i32, %arg2: memref<128x128xf32, #tpu.memory_space<vmem>>, %arg3: memref<128x128xf32, #tpu.memory_space<vmem>>, %arg4: memref<3x128xf32, #tpu.memory_space<vmem>>, %arg5: memref<128x128xf32, #tpu.memory_space<vmem>>) attributes {dimension_semantics = [#tpu.dimension_semantics<parallel>, #tpu.dimension_semantics<parallel>], iteration_bounds = array<i64: 2, 3>, scalar_prefetch = 0 : i64, scratch_operands = 0 : i64, tpu.core_type = #tpu.core_type<tc>, window_params = [{transform_indices = @transform_0, window_bounds = array<i64: 128, 128>}, {transform_indices = @transform_1, window_bounds = array<i64: 128, 128>}, {transform_indices = @transform_2, window_bounds = array<i64: 3, 128>}, {transform_indices = @transform_3, window_bounds = array<i64: 128, 128>}]} {
    %c0 = arith.constant 0 : index
    %c0_0 = arith.constant 0 : index
    %0 = vector.load %arg4[%c0, %c0_0] : memref<3x128xf32, #tpu.memory_space<vmem>>, vector<1x128xf32>
    %c1 = arith.constant 1 : index
    %c0_1 = arith.constant 0 : index
    %1 = vector.load %arg4[%c1, %c0_1] : memref<3x128xf32, #tpu.memory_space<vmem>>, vector<1x128xf32>
    %c2 = arith.constant 2 : index
    %c0_2 = arith.constant 0 : index
    %2 = vector.load %arg4[%c2, %c0_2] : memref<3x128xf32, #tpu.memory_space<vmem>>, vector<1x128xf32>
    %c0_3 = arith.constant 0 : index
    %c0_4 = arith.constant 0 : index
    %3 = vector.load %arg2[%c0_3, %c0_4] : memref<128x128xf32, #tpu.memory_space<vmem>>, vector<128x128xf32>
    %4 = vector.broadcast %0 : vector<1x128xf32> to vector<128x128xf32>
    %5 = arith.mulf %3, %4 : vector<128x128xf32>
    %c0_5 = arith.constant 0 : index
    %c0_6 = arith.constant 0 : index
    %6 = vector.load %arg3[%c0_5, %c0_6] : memref<128x128xf32, #tpu.memory_space<vmem>>, vector<128x128xf32>
    %7 = vector.broadcast %1 : vector<1x128xf32> to vector<128x128xf32>
    %8 = arith.mulf %6, %7 : vector<128x128xf32>
    %9 = arith.addf %5, %8 : vector<128x128xf32>
    %10 = vector.broadcast %2 : vector<1x128xf32> to vector<128x128xf32>
    %11 = arith.addf %9, %10 : vector<128x128xf32>
    %c0_7 = arith.constant 0 : index
    %c0_8 = arith.constant 0 : index
    %12 = vector.load %arg5[%c0_7, %c0_8] : memref<128x128xf32, #tpu.memory_space<vmem>>, vector<128x128xf32>
    tpu.vector_store %arg5[%c0_7, %c0_8], %11 {strides = array<i32>} : memref<128x128xf32, #tpu.memory_space<vmem>>, vector<128x128xf32>,
    return
  }
  func.func @transform_0(%arg0: i32, %arg1: i32) -> (i32, i32) {
    %c0_i32 = arith.constant 0 : i32
    return %arg1, %arg0 : i32, i32
  }
  func.func @transform_1(%arg0: i32, %arg1: i32) -> (i32, i32) {
    %c2_i32 = arith.constant 2 : i32
    %0 = arith.addi %arg0, %c2_i32 : i32
    %c0_i32 = arith.constant 0 : i32
    return %arg1, %0 : i32, i32
  }
  func.func @transform_2(%arg0: i32, %arg1: i32) -> (i32, i32) {
    %c0_i32 = arith.constant 0 : i32
    %c0_i32_0 = arith.constant 0 : i32
    return %c0_i32, %arg0 : i32, i32
  }
  func.func @transform_3(%arg0: i32, %arg1: i32) -> (i32, i32) {
    %c0_i32 = arith.constant 0 : i32
    return %arg1, %arg0 : i32, i32
  }
}

</mosaic_0001>

<llo_original>
// kernel: tpu_custom_call.1
$region0: #{tpu_custom_call.1}
  #allocation0 [shape = 'u32[]', space=smem, size = 0x4, offset = 0x4, fixed_abs, tag = 'smem constant byte address 0x4 - core index']
  #allocation1 [shape = 'u32[72,128]{1,0:T(1,128)}', space=vmem, size = 0x9000, scoped, tag = 'internal scratch']
  %s0 = inlined_call_operand.hbm [shape: f32[384,512], index: 0, kind: input, shape index: {}]
  %s1 = inlined_call_operand.hbm [shape: f32[384,512], index: 1, kind: input, shape index: {}]
  %s2 = inlined_call_operand.hbm [shape: f32[3,256], index: 2, kind: input, shape index: {}]
  %s3 = inlined_call_operand.hbm [shape: f32[384,256], index: 3, kind: output, shape index: {}]
  %s4 = sld [smem:[#allocation0]]
  $region57: #{tpu_custom_call.1} parent=0
    _
  %s6 = ssub.s32 1, %s4
  %s7 = scalar_select 0, %s6, %s4
  $region1: #{tpu_custom_call.1} parent=0
    #allocation2 [shape = 'u8[131072]{0}', space=vmem, size = 0x20000, scoped, tag = 'input window, operand 0']
    #allocation3 [shape = 's32[2]{0}', space=sflag, size = 0x8, scoped, tag = 'scoped memory for tpu_custom_call.1']
    #allocation4 [shape = 's32[2]{0}', space=sflag, size = 0x8, scoped, tag = 'scoped memory for tpu_custom_call.1']
    #allocation5 [shape = 'u8[131072]{0}', space=vmem, size = 0x20000, scoped, tag = 'input window, operand 1']
    #allocation6 [shape = 's32[2]{0}', space=sflag, size = 0x8, scoped, tag = 'scoped memory for tpu_custom_call.1']
    #allocation7 [shape = 'u8[4096]{0}', space=vmem, size = 0x1000, scoped, tag = 'input window, operand 2']
    #allocation8 [shape = 'u8[131072]{0}', space=vmem, size = 0x20000, scoped, tag = 'output window, operand 0']
    %8 = vsyncpa [#allocation3], 0
    %s9 = scalar_lea.sflag [#allocation3], 1
    %10 = vsyncpa %s9, 0
    %11 = vsyncpa [#allocation6], 0
    %s12 = scalar_lea.sflag [#allocation6], 1
    %13 = vsyncpa %s12, 0
    %14 = vsyncpa [#allocation4], 0
    %s15 = scalar_lea.sflag [#allocation4], 1
    %16 = vsyncpa %s15, 0
    loop: start=0, step=1, limit=8
    $region2: #{tpu_custom_call.1} parent=1 // loop_pre_header
      _
    $region3: #{tpu_custom_call.1} parent=1 // loop_header
      %s18 = sphi 0, %s22
      %p19 = scmp.ge.s32.totalorder %s18, 8
      %s25 = sphi 0, %s37
      %s26 = sphi 0, %s33
      %s27 = sphi 0, %s25
      %s28 = sphi 0, %s26
      %s29 = sphi 0, %s27
      %s30 = sphi 0, %s28
      %s42 = sphi 0, %s44
      %s45 = sphi 0, %s42
      %s46 = sphi 0, %s45
      %s62 = sphi 0, %s46
      %s72 = sphi 0, %s74
      %s75 = sphi 0, %s72
      %s76 = sphi 0, %s75
      %s92 = sphi 0, %s76
      %s98 = sphi 0, %s100
      %s101 = sphi 0, %s98
      %s102 = sphi 0, %s101
      %s118 = sphi 0, %s102
      %s126 = sphi 0, %s128
      %s129 = sphi 0, %s126
      %s130 = sphi 0, %s129
      %s146 = sphi 0, %s130
    $region4: #{tpu_custom_call.1} parent=1 // loop_header_branch
      %21 = sbr.rel (%p19) target = $region8
    $region5: #{tpu_custom_call.1} parent=1 // loop_body
      %s23 = ssub.s32 %s18, 1
      %s24 = ssub.s32 %s18, 2
      %s31 = sadd.s32 1, %s26
      %p32 = scmp.ge.s32.totalorder %s31, 3
      %s33 = scalar_select %p32, 0, %s31
      %s34 = sadd.s32 1, %s25
      %s35 = scalar_select %p32, %s34, %s25
      %p36 = scmp.ge.s32.totalorder %s35, 2
      %s37 = scalar_select %p36, 0, %s35
      %s38 = ssub.s32 %s26, %s33
      %s39 = ssub.s32 %s25, %s37
      %s40 = sor.u32 %s38, %s39
      %p41 = scmp.eq.s32.totalorder %s40, 0
      %s43 = sadd.s32 %s42, 1
      %s44 = scalar_select %p41, %s42, %s43
      %p47 = pneg %p41
      %p48 = scmp.eq.s32.totalorder %s18, 5
      %p49 = por %p47, %p48
      %p50 = scmp.ne.s32.totalorder %s42, %s45
      %p51 = scmp.eq.s32.totalorder %s18, 0
      %p52 = por %p50, %p51
      %p53 = scmp.ne.s32.totalorder %s42, %s45
      %p54 = scmp.eq.s32.totalorder %s23, 5
      %p55 = por %p53, %p54
      %p56 = scmp.ne.s32.totalorder %s45, %s46
      %p57 = scmp.eq.s32.totalorder %s23, 0
      %p58 = por %p56, %p57
      %p59 = scmp.ne.s32.totalorder %s45, %s46
      %p60 = scmp.eq.s32.totalorder %s24, 5
      %p61 = por %p59, %p60
      %p63 = scmp.ne.s32.totalorder %s46, %s62
      %p64 = scmp.eq.s32.totalorder %s24, 0
      %p65 = por %p63, %p64
      %s66 = sadd.s32 %s25, 2
      %s67 = sadd.s32 %s37, 2
      %s68 = ssub.s32 %s26, %s33
      %s69 = ssub.s32 %s66, %s67
      %s70 = sor.u32 %s68, %s69
      %p71 = scmp.eq.s32.totalorder %s70, 0
      %s73 = sadd.s32 %s72, 1
      %s74 = scalar_select %p71, %s72, %s73
      %p77 = pneg %p71
      %p78 = scmp.eq.s32.totalorder %s18, 5
      %p79 = por %p77, %p78
      %p80 = scmp.ne.s32.totalorder %s72, %s75
      %p81 = scmp.eq.s32.totalorder %s18, 0
      %p82 = por %p80, %p81
      %p83 = scmp.ne.s32.totalorder %s72, %s75
      %p84 = scmp.eq.s32.totalorder %s23, 5
      %p85 = por %p83, %p84
      %p86 = scmp.ne.s32.totalorder %s75, %s76
      %p87 = scmp.eq.s32.totalorder %s23, 0
      %p88 = por %p86, %p87
      %p89 = scmp.ne.s32.totalorder %s75, %s76
      %p90 = scmp.eq.s32.totalorder %s24, 5
      %p91 = por %p89, %p90
      %p93 = scmp.ne.s32.totalorder %s76, %s92
      %p94 = scmp.eq.s32.totalorder %s24, 0
      %p95 = por %p93, %p94
      %s96 = ssub.s32 %s25, %s37
      %p97 = scmp.eq.s32.totalorder %s96, 0
      %s99 = sadd.s32 %s98, 1
      %s100 = scalar_select %p97, %s98, %s99
      %p103 = pneg %p97
      %p104 = scmp.eq.s32.totalorder %s18, 5
      %p105 = por %p103, %p104
      %p106 = scmp.ne.s32.totalorder %s98, %s101
      %p107 = scmp.eq.s32.totalorder %s18, 0
      %p108 = por %p106, %p107
      %p109 = scmp.ne.s32.totalorder %s98, %s101
      %p110 = scmp.eq.s32.totalorder %s23, 5
      %p111 = por %p109, %p110
      %p112 = scmp.ne.s32.totalorder %s101, %s102
      %p113 = scmp.eq.s32.totalorder %s23, 0
      %p114 = por %p112, %p113
      %p115 = scmp.ne.s32.totalorder %s101, %s102
      %p116 = scmp.eq.s32.totalorder %s24, 5
      %p117 = por %p115, %p116
      %p119 = scmp.ne.s32.totalorder %s102, %s118
      %p120 = scmp.eq.s32.totalorder %s24, 0
      %p121 = por %p119, %p120
      %s122 = ssub.s32 %s26, %s33
      %s123 = ssub.s32 %s25, %s37
      %s124 = sor.u32 %s122, %s123
      %p125 = scmp.eq.s32.totalorder %s124, 0
      %s127 = sadd.s32 %s126, 1
      %s128 = scalar_select %p125, %s126, %s127
      %p131 = pneg %p125
      %p132 = scmp.eq.s32.totalorder %s18, 5
      %p133 = por %p131, %p132
      %p134 = scmp.ne.s32.totalorder %s126, %s129
      %p135 = scmp.eq.s32.totalorder %s18, 0
      %p136 = por %p134, %p135
      %p137 = scmp.ne.s32.totalorder %s126, %s129
      %p138 = scmp.eq.s32.totalorder %s23, 5
      %p139 = por %p137, %p138
      %p140 = scmp.ne.s32.totalorder %s129, %s130
      %p141 = scmp.eq.s32.totalorder %s23, 0
      %p142 = por %p140, %p141
      %p143 = scmp.ne.s32.totalorder %s129, %s130
      %p144 = scmp.eq.s32.totalorder %s24, 5
      %p145 = por %p143, %p144
      %p147 = scmp.ne.s32.totalorder %s130, %s146
      %p148 = scmp.eq.s32.totalorder %s24, 0
      %p149 = por %p147, %p148
      %p150 = scmp.le.s32.totalorder 1, %s18
      %p151 = scmp.lt.s32.totalorder %s18, 7
      %p152 = pnand %p150, %p151
      %p153 = pneg %p152
      // Predicated region
      $region9: #{tpu_custom_call.1} parent=5 // pred_check
        _
      $region10: #{tpu_custom_call.1} parent=5 // pred_check_branch
        %155 = sbr.rel (%p152) target = $region12
      $region11: #{tpu_custom_call.1} parent=5 // pred_region
        %s156 = ssub.s32 %s18, 1
      $region12: #{tpu_custom_call.1} parent=5 // pred_fallthru
        _
      %p157 = scmp.lt.s32.totalorder %s18, 6
      // Predicated region
      $region13: #{tpu_custom_call.1} parent=5 // pred_check
        %p158 = pneg %p157
      $region14: #{tpu_custom_call.1} parent=5 // pred_check_branch
        %160 = sbr.rel (%p158) target = $region16
      $region15: #{tpu_custom_call.1} parent=5 // pred_region
        // Predicated region
        $region17: #{tpu_custom_call.1} parent=15 // pred_check
          %p161 = pneg %p52
        $region18: #{tpu_custom_call.1} parent=15 // pred_check_branch
          %163 = sbr.rel (%p161) target = $region20
        $region19: #{tpu_custom_call.1} parent=15 // pred_region
          %s164 = sand.u32 %s42, 1
          %s165 = scalar_lea.sflag [#allocation3], %s164
          %s166 = sand.u32 %s42, 1
          %s167 = smul.addr %s166, 128
          %s168 = scalar_lea.vmem [#allocation2], %s167
          %s169 = smul.u32 16, %s26
          %171 = vsyncadd %s165, 0
          %s172 = smul.addr %s169, 4
          %s173 = sadd.s32 %s25, %s172
          %s174 = smul.addr %s173, 8
          %s175 = scalar_lea.hbm %s0, %s174
          %s176 = sshll.u32 %s175, 4
          %s177 = int_to_ptr.hbm [resolvable:$true] %s176
          %s178 = sshll.u32 %s168, 4
          %s179 = int_to_ptr.vmem [resolvable:$true] %s178
          %184 = dma.hbm_to_vmem [thread:$0]  %s177, 2048, %s179, %s165, 512, 128, 8
        $region20: #{tpu_custom_call.1} parent=15 // pred_fallthru
          _
        // Predicated region
        $region21: #{tpu_custom_call.1} parent=15 // pred_check
          %p185 = pneg %p82
        $region22: #{tpu_custom_call.1} parent=15 // pred_check_branch
          %187 = sbr.rel (%p185) target = $region24
        $region23: #{tpu_custom_call.1} parent=15 // pred_region
          %s188 = sand.u32 %s18, 1
          %s189 = scalar_lea.sflag [#allocation6], %s188
          %s190 = sand.u32 %s72, 1
          %s191 = smul.addr %s190, 128
          %s192 = scalar_lea.vmem [#allocation5], %s191
          %s193 = sadd.s32 %s25, 2
          %s194 = smul.u32 16, %s26
          %196 = vsyncadd %s189, 0
          %s197 = smul.addr %s194, 4
          %s198 = sadd.s32 %s193, %s197
          %s199 = smul.addr %s198, 8
          %s200 = scalar_lea.hbm %s1, %s199
          %s201 = sshll.u32 %s200, 4
          %s202 = int_to_ptr.hbm [resolvable:$true] %s201
          %s203 = sshll.u32 %s192, 4
          %s204 = int_to_ptr.vmem [resolvable:$true] %s203
          %209 = dma.hbm_to_vmem [thread:$0]  %s202, 2048, %s204, %s189, 512, 128, 8
        $region24: #{tpu_custom_call.1} parent=15 // pred_fallthru
          _
        // Predicated region
        $region25: #{tpu_custom_call.1} parent=15 // pred_check
          %p210 = pneg %p108
        $region26: #{tpu_custom_call.1} parent=15 // pred_check_branch
          %212 = sbr.rel (%p210) target = $region28
        $region27: #{tpu_custom_call.1} parent=15 // pred_region
          %s213 = sand.u32 %s18, 1
          %s214 = scalar_lea.sflag [#allocation6], %s213
          %s215 = sand.u32 %s98, 1
          %s216 = smul.addr %s215, 4
          %s217 = scalar_lea.vmem [#allocation7], %s216
          %219 = vsyncadd %s214, 0
          %s220 = smul.addr %s25, 4
          %s221 = scalar_lea.hbm %s2, %s220
          %s223 = sshll.u32 %s221, 4
          %s224 = int_to_ptr.hbm [resolvable:$true] %s223
          %s225 = sshll.u32 %s217, 4
          %s226 = int_to_ptr.vmem [resolvable:$true] %s225
          %228 = dma.hbm_to_vmem [thread:$0]  %s224, 64, %s226, %s214
        $region28: #{tpu_custom_call.1} parent=15 // pred_fallthru
          _
      $region16: #{tpu_custom_call.1} parent=5 // pred_fallthru
        _
      %p229 = scmp.le.s32.totalorder 1, %s18
      %p230 = scmp.lt.s32.totalorder %s18, 7
      %p231 = pnand %p229, %p230
      %p232 = pneg %p231
      // Predicated region
      $region29: #{tpu_custom_call.1} parent=5 // pred_check
        _
      $region30: #{tpu_custom_call.1} parent=5 // pred_check_branch
        %234 = sbr.rel (%p231) target = $region32
      $region31: #{tpu_custom_call.1} parent=5 // pred_region
        %s235 = ssub.s32 %s18, 1
        %s236 = sand.u32 %s45, 1
        %s237 = scalar_lea.sflag [#allocation3], %s236
        %s238 = sand.u32 %s45, 1
        %s239 = smul.addr %s238, 128
        %s240 = scalar_lea.vmem [#allocation2], %s239
        // Predicated region
        $region33: #{tpu_custom_call.1} parent=31 // pred_check
          %p241 = pneg %p58
        $region34: #{tpu_custom_call.1} parent=31 // pred_check_branch
          %243 = sbr.rel (%p241) target = $region36
        $region35: #{tpu_custom_call.1} parent=31 // pred_region
          %245 = dma.done %s237, 2048
        $region36: #{tpu_custom_call.1} parent=31 // pred_fallthru
          _
        %s246 = sand.u32 %s23, 1
        %s247 = scalar_lea.sflag [#allocation6], %s246
        %s248 = sand.u32 %s75, 1
        %s249 = smul.addr %s248, 128
        %s250 = scalar_lea.vmem [#allocation5], %s249
        // Predicated region
        $region37: #{tpu_custom_call.1} parent=31 // pred_check
          %p251 = pneg %p88
        $region38: #{tpu_custom_call.1} parent=31 // pred_check_branch
          %253 = sbr.rel (%p251) target = $region40
        $region39: #{tpu_custom_call.1} parent=31 // pred_region
          %255 = dma.done %s247, 2048
        $region40: #{tpu_custom_call.1} parent=31 // pred_fallthru
          _
        %s256 = sand.u32 %s23, 1
        %s257 = scalar_lea.sflag [#allocation6], %s256
        %s258 = sand.u32 %s101, 1
        %s259 = smul.addr %s258, 4
        %s260 = scalar_lea.vmem [#allocation7], %s259
        // Predicated region
        $region41: #{tpu_custom_call.1} parent=31 // pred_check
          %p261 = pneg %p114
        $region42: #{tpu_custom_call.1} parent=31 // pred_check_branch
          %263 = sbr.rel (%p261) target = $region44
        $region43: #{tpu_custom_call.1} parent=31 // pred_region
          %265 = dma.done %s257, 64
        $region44: #{tpu_custom_call.1} parent=31 // pred_fallthru
          _
        %s266 = sand.u32 %s45, 1
        %s267 = scalar_lea.sflag [#allocation3], %s266
        %s268 = sand.u32 %s45, 1
        %s269 = smul.addr %s268, 128
        %s270 = scalar_lea.vmem [#allocation2], %s269
        %p271 = pneg %p58
        %p272 = pneg %p55
        %s273 = sand.u32 %s23, 1
        %s274 = scalar_lea.sflag [#allocation6], %s273
        %s275 = sand.u32 %s75, 1
        %s276 = smul.addr %s275, 128
        %s277 = scalar_lea.vmem [#allocation5], %s276
        %p278 = pneg %p88
        %p279 = pneg %p85
        %s280 = sand.u32 %s23, 1
        %s281 = scalar_lea.sflag [#allocation6], %s280
        %s282 = sand.u32 %s101, 1
        %s283 = smul.addr %s282, 4
        %s284 = scalar_lea.vmem [#allocation7], %s283
        %p285 = pneg %p114
        %p286 = pneg %p111
        %p287 = pneg %p142
        %p288 = pneg %p139
        %s289 = sand.u32 %s129, 1
        %s290 = scalar_lea.sflag [#allocation4], %s289
        %s291 = sand.u32 %s129, 1
        %s292 = smul.addr %s291, 128
        %s293 = scalar_lea.vmem [#allocation8], %s292
        %s294 = smul.u32 16, %s28
        %s295 = sadd.s32 %s27, 2
        %s296 = smul.u32 16, %s28
        %s297 = smul.u32 16, %s28
        %v298 = vld [vmem:[%s260] sm:$0x1]
        %v299 = vld [vmem:[%s260 + $0x1] sm:$0x1]
        %v300 = vld [vmem:[%s260 + $0x2] sm:$0x1]
        %v301 = vld [vmem:[%s240] sm:$0xff]
        %v302 = vld [vmem:[%s240 + $0x8] sm:$0xff]
        %v303 = vld [vmem:[%s240 + $0x10] sm:$0xff]
        %v304 = vld [vmem:[%s240 + $0x18] sm:$0xff]
        %v305 = vld [vmem:[%s240 + $0x20] sm:$0xff]
        %v306 = vld [vmem:[%s240 + $0x28] sm:$0xff]
        %v307 = vld [vmem:[%s240 + $0x30] sm:$0xff]
        %v308 = vld [vmem:[%s240 + $0x38] sm:$0xff]
        %v309 = vld [vmem:[%s240 + $0x40] sm:$0xff]
        %v310 = vld [vmem:[%s240 + $0x48] sm:$0xff]
        %v311 = vld [vmem:[%s240 + $0x50] sm:$0xff]
        %v312 = vld [vmem:[%s240 + $0x58] sm:$0xff]
        %v313 = vld [vmem:[%s240 + $0x60] sm:$0xff]
        %v314 = vld [vmem:[%s240 + $0x68] sm:$0xff]
        %v315 = vld [vmem:[%s240 + $0x70] sm:$0xff]
        %v316 = vld [vmem:[%s240 + $0x78] sm:$0xff]
        %v317 = vperm.slane %v298, 0
        %v318 = vmul.f32 %v301, %v317
        %v319 = vmul.f32 %v302, %v317
        %v320 = vmul.f32 %v303, %v317
        %v321 = vmul.f32 %v304, %v317
        %v322 = vmul.f32 %v305, %v317
        %v323 = vmul.f32 %v306, %v317
        %v324 = vmul.f32 %v307, %v317
        %v325 = vmul.f32 %v308, %v317
        %v326 = vmul.f32 %v309, %v317
        %v327 = vmul.f32 %v310, %v317
        %v328 = vmul.f32 %v311, %v317
        %v329 = vmul.f32 %v312, %v317
        %v330 = vmul.f32 %v313, %v317
        %v331 = vmul.f32 %v314, %v317
        %v332 = vmul.f32 %v315, %v317
        %v333 = vmul.f32 %v316, %v317
        %v334 = vld [vmem:[%s250] sm:$0xff]
        %v335 = vld [vmem:[%s250 + $0x8] sm:$0xff]
        %v336 = vld [vmem:[%s250 + $0x10] sm:$0xff]
        %v337 = vld [vmem:[%s250 + $0x18] sm:$0xff]
        %v338 = vld [vmem:[%s250 + $0x20] sm:$0xff]
        %v339 = vld [vmem:[%s250 + $0x28] sm:$0xff]
        %v340 = vld [vmem:[%s250 + $0x30] sm:$0xff]
        %v341 = vld [vmem:[%s250 + $0x38] sm:$0xff]
        %v342 = vld [vmem:[%s250 + $0x40] sm:$0xff]
        %v343 = vld [vmem:[%s250 + $0x48] sm:$0xff]
        %v344 = vld [vmem:[%s250 + $0x50] sm:$0xff]
        %v345 = vld [vmem:[%s250 + $0x58] sm:$0xff]
        %v346 = vld [vmem:[%s250 + $0x60] sm:$0xff]
        %v347 = vld [vmem:[%s250 + $0x68] sm:$0xff]
        %v348 = vld [vmem:[%s250 + $0x70] sm:$0xff]
        %v349 = vld [vmem:[%s250 + $0x78] sm:$0xff]
        %v350 = vperm.slane %v299, 0
        %v351 = vmul.f32 %v334, %v350
        %v352 = vmul.f32 %v335, %v350
        %v353 = vmul.f32 %v336, %v350
        %v354 = vmul.f32 %v337, %v350
        %v355 = vmul.f32 %v338, %v350
        %v356 = vmul.f32 %v339, %v350
        %v357 = vmul.f32 %v340, %v350
        %v358 = vmul.f32 %v341, %v350
        %v359 = vmul.f32 %v342, %v350
        %v360 = vmul.f32 %v343, %v350
        %v361 = vmul.f32 %v344, %v350
        %v362 = vmul.f32 %v345, %v350
        %v363 = vmul.f32 %v346, %v350
        %v364 = vmul.f32 %v347, %v350
        %v365 = vmul.f32 %v348, %v350
        %v366 = vmul.f32 %v349, %v350
        %v367 = vadd.f32 %v318, %v351
        %v368 = vadd.f32 %v319, %v352
        %v369 = vadd.f32 %v320, %v353
        %v370 = vadd.f32 %v321, %v354
        %v371 = vadd.f32 %v322, %v355
        %v372 = vadd.f32 %v323, %v356
        %v373 = vadd.f32 %v324, %v357
        %v374 = vadd.f32 %v325, %v358
        %v375 = vadd.f32 %v326, %v359
        %v376 = vadd.f32 %v327, %v360
        %v377 = vadd.f32 %v328, %v361
        %v378 = vadd.f32 %v329, %v362
        %v379 = vadd.f32 %v330, %v363
        %v380 = vadd.f32 %v331, %v364
        %v381 = vadd.f32 %v332, %v365
        %v382 = vadd.f32 %v333, %v366
        %v383 = vperm.slane %v300, 0
        %v384 = vadd.f32 %v367, %v383
        %v385 = vadd.f32 %v368, %v383
        %v386 = vadd.f32 %v369, %v383
        %v387 = vadd.f32 %v370, %v383
        %v388 = vadd.f32 %v371, %v383
        %v389 = vadd.f32 %v372, %v383
        %v390 = vadd.f32 %v373, %v383
        %v391 = vadd.f32 %v374, %v383
        %v392 = vadd.f32 %v375, %v383
        %v393 = vadd.f32 %v376, %v383
        %v394 = vadd.f32 %v377, %v383
        %v395 = vadd.f32 %v378, %v383
        %v396 = vadd.f32 %v379, %v383
        %v397 = vadd.f32 %v380, %v383
        %v398 = vadd.f32 %v381, %v383
        %v399 = vadd.f32 %v382, %v383
        %400 = vst [vmem:[%s293] sm:$0xff] %v384
        %401 = vst [vmem:[%s293 + $0x8] sm:$0xff] %v385
        %402 = vst [vmem:[%s293 + $0x10] sm:$0xff] %v386
        %403 = vst [vmem:[%s293 + $0x18] sm:$0xff] %v387
        %404 = vst [vmem:[%s293 + $0x20] sm:$0xff] %v388
        %405 = vst [vmem:[%s293 + $0x28] sm:$0xff] %v389
        %406 = vst [vmem:[%s293 + $0x30] sm:$0xff] %v390
        %407 = vst [vmem:[%s293 + $0x38] sm:$0xff] %v391
        %408 = vst [vmem:[%s293 + $0x40] sm:$0xff] %v392
        %409 = vst [vmem:[%s293 + $0x48] sm:$0xff] %v393
        %410 = vst [vmem:[%s293 + $0x50] sm:$0xff] %v394
        %411 = vst [vmem:[%s293 + $0x58] sm:$0xff] %v395
        %412 = vst [vmem:[%s293 + $0x60] sm:$0xff] %v396
        %413 = vst [vmem:[%s293 + $0x68] sm:$0xff] %v397
        %414 = vst [vmem:[%s293 + $0x70] sm:$0xff] %v398
        %415 = vst [vmem:[%s293 + $0x78] sm:$0xff] %v399
        %s416 = sand.u32 %s129, 1
        %s417 = scalar_lea.sflag [#allocation4], %s416
        %s418 = sand.u32 %s129, 1
        %s419 = smul.addr %s418, 128
        %s420 = scalar_lea.vmem [#allocation8], %s419
        // Predicated region
        $region45: #{tpu_custom_call.1} parent=31 // pred_check
          %p421 = pneg %p139
        $region46: #{tpu_custom_call.1} parent=31 // pred_check_branch
          %423 = sbr.rel (%p421) target = $region48
        $region47: #{tpu_custom_call.1} parent=31 // pred_region
          %s424 = smul.u32 16, %s28
          %426 = vsyncadd %s417, 0
          %s427 = smul.addr %s424, 2
          %s428 = sadd.s32 %s27, %s427
          %s429 = smul.addr %s428, 8
          %s430 = scalar_lea.hbm %s3, %s429
          %s431 = sshll.u32 %s420, 4
          %s432 = int_to_ptr.vmem [resolvable:$true] %s431
          %s433 = sshll.u32 %s430, 4
          %s434 = int_to_ptr.hbm [resolvable:$true] %s433
          %439 = dma.vmem_to_hbm [thread:$0]  %s432, 2048, %s434, %s417, 128, 256, 8
        $region48: #{tpu_custom_call.1} parent=31 // pred_fallthru
          _
      $region32: #{tpu_custom_call.1} parent=5 // pred_fallthru
        _
      %p440 = scmp.le.s32.totalorder 2, %s18
      // Predicated region
      $region49: #{tpu_custom_call.1} parent=5 // pred_check
        %p441 = pneg %p440
      $region50: #{tpu_custom_call.1} parent=5 // pred_check_branch
        %443 = sbr.rel (%p441) target = $region52
      $region51: #{tpu_custom_call.1} parent=5 // pred_region
        %s444 = ssub.s32 %s18, 2
        // Predicated region
        $region53: #{tpu_custom_call.1} parent=51 // pred_check
          %p445 = pneg %p145
        $region54: #{tpu_custom_call.1} parent=51 // pred_check_branch
          %447 = sbr.rel (%p445) target = $region56
        $region55: #{tpu_custom_call.1} parent=51 // pred_region
          %s448 = sand.u32 %s130, 1
          %s449 = scalar_lea.sflag [#allocation4], %s448
          %s450 = sand.u32 %s130, 1
          %s451 = smul.addr %s450, 128
          %s452 = scalar_lea.vmem [#allocation8], %s451
          %454 = dma.done %s449, 2048
        $region56: #{tpu_custom_call.1} parent=51 // pred_fallthru
          _
      $region52: #{tpu_custom_call.1} parent=5 // pred_fallthru
        _
    $region6: #{tpu_custom_call.1} parent=1 // loop_footer
      %s22 = sadd.s32 1, %s18
    $region7: #{tpu_custom_call.1} parent=1 // loop_footer_branch
      %17 = sbr.rel target = $region3
    $region8: #{tpu_custom_call.1} parent=1 // loop_exit
      _
    %455 = vsyncpa [#allocation3], 1
    %s456 = scalar_lea.sflag [#allocation3], 1
    %457 = vsyncpa %s456, 1
    %458 = vsyncpa [#allocation6], 1
    %s459 = scalar_lea.sflag [#allocation6], 1
    %460 = vsyncpa %s459, 1
    %461 = vsyncpa [#allocation4], 1
    %s462 = scalar_lea.sflag [#allocation4], 1
    %463 = vsyncpa %s462, 1

</llo_original>
